<compile_context>
chip_gen: v5e
topology: v5e:2x2
jax: 0.10.0
libtpu: 0.0.40
codegen_flags: <defaults>
</compile_context>

<pallas_src>
import jax
import jax.numpy as jnp
from jax.experimental import pallas as pl
from jax.experimental.pallas import tpu as pltpu


def _round_up(n, m):
    return ((n + m - 1) // m) * m


# --------------------------------------------------------------------------
# Small-problem fast path: whole-array blocks, single grid step, VPU only.
# Used when In is tiny (rank-k update is cheaper than an MXU round trip).
# --------------------------------------------------------------------------
def _linear_small_kernel(x_ref, w_ref, b_ref, o_ref):
    x = x_ref[...]                      # (B, In)
    w = w_ref[...]                      # (In, Out)  (pre-transposed weight)
    b = b_ref[...]                      # (1, Out)
    # Contraction as a sum of rank-1 broadcast multiply-adds (VPU, no MXU).
    acc = x[:, 0:1] * w[0:1, :]
    for k in range(1, x.shape[1]):      # In is tiny and static here
        acc = acc + x[:, k:k + 1] * w[k:k + 1, :]
    o_ref[...] = (acc + b).astype(o_ref.dtype)


# --------------------------------------------------------------------------
# General path: M/N-tiled MXU matmul, full-K blocks, bias fused, no scratch.
# --------------------------------------------------------------------------
def _linear_kernel(x_ref, w_ref, b_ref, o_ref):
    o_ref[...] = (jnp.dot(x_ref[...], w_ref[...],
                          preferred_element_type=jnp.float32)
                  + b_ref[...]).astype(o_ref.dtype)


def _pick_tiles(B, Out, tm=256, tn=256):
    """Lane-dense, MXU-aligned tiles clamped to the problem size."""
    tm = min(tm, _round_up(B, 8))       # second-last dim: multiple of 8
    tn = min(tn, _round_up(Out, 128))   # last dim: multiple of 128
    # v7x has 2 TensorCores: keep >=2 parallel tiles when the problem is big
    # enough to split, so megacore sharding is not a 1x1 grid on one core.
    if pl.cdiv(B, tm) * pl.cdiv(Out, tn) == 1:
        if Out > 128:
            tn = max(128, _round_up(pl.cdiv(Out, 2), 128))
        elif B > 8:
            tm = max(8, _round_up(pl.cdiv(B, 2), 8))
    return tm, tn


def linear_forward(x, w_t, bias, *, tm=256, tn=256):
    """pred = x @ w_t + bias  (== x @ W^T + b, with W stored pre-transposed).

    x:    (B, In)   f32
    w_t:  (In, Out) f32   -- weight kept in (In, Out) layout at parameter
                             creation; hoists the transpose out of the forward.
    bias: (Out,)    f32
    """
    B, In = x.shape
    In2, Out = w_t.shape
    assert In2 == In, (In2, In)
    b2 = bias.reshape(1, Out)

    # Exact (unpadded) work -- kernel executes exactly this much now.
    cost = pl.CostEstimate(
        flops=2 * B * In * Out,
        transcendentals=0,
        bytes_accessed=4 * (B * In + In * Out + Out + B * Out),
    )

    # ---- tiny-problem fast path (dispatch/latency bound; skip the MXU) ----
    if In <= 8 and B <= 512 and Out <= 512:
        # TODO(synk): Out=1 makes the output lane axis 1-wide (masked stores);
        # acceptable for the toy LR case, batch heads to >=128 lanes if real.
        return pl.pallas_call(
            _linear_small_kernel,
            out_shape=jax.ShapeDtypeStruct((B, Out), x.dtype),
            grid_spec=pltpu.PrefetchScalarGridSpec(
                num_scalar_prefetch=0,
                grid=(1,),
                in_specs=[
                    pl.BlockSpec((B, In), lambda i: (0, 0)),
                    pl.BlockSpec((In, Out), lambda i: (0, 0)),
                    pl.BlockSpec((1, Out), lambda i: (0, 0)),
                ],
                out_specs=pl.BlockSpec((B, Out), lambda i: (0, 0)),
            ),
            compiler_params=pltpu.CompilerParams(
                dimension_semantics=("arbitrary",)),
            cost_estimate=cost,
        )(x, w_t, b2)

    # ---- general path: exact shapes, cdiv grid, full-K blocks -------------
    tm, tn = _pick_tiles(B, Out, tm, tn)
    grid = (pl.cdiv(B, tm), pl.cdiv(Out, tn))

    return pl.pallas_call(
        _linear_kernel,
        out_shape=jax.ShapeDtypeStruct((B, Out), x.dtype),
        grid_spec=pltpu.PrefetchScalarGridSpec(
            num_scalar_prefetch=0,
            grid=grid,
            in_specs=[
                pl.BlockSpec((tm, In), lambda i, j: (i, 0)),   # full-K block
                pl.BlockSpec((In, tn), lambda i, j: (0, j)),   # full-K block
                pl.BlockSpec((1, tn), lambda i, j: (0, j)),
            ],
            out_specs=pl.BlockSpec((tm, tn), lambda i, j: (i, j)),
        ),
        compiler_params=pltpu.CompilerParams(
            dimension_semantics=("parallel", "parallel")),
        cost_estimate=cost,
    )(x, w_t, b2)


if __name__ == "__main__":
    # --- toy case matching the lab script: x = [[1.0], [2.0]], LR(1, 1) ---
    input_size, output_size = 1, 1

    key = jax.random.PRNGKey(0)
    k_w, k_b, k_x2, k_w2, k_b2 = jax.random.split(key, 5)

    # nn.Linear default init: U(-1/sqrt(in), 1/sqrt(in)) for weight and bias.
    bound = 1.0 / (input_size ** 0.5)
    # Parameter kept pre-transposed as (In, Out) so the forward never transposes.
    weight_t = jax.random.uniform(
        k_w, (input_size, output_size), jnp.float32, minval=-bound, maxval=bound)
    bias = jax.random.uniform(
        k_b, (output_size,), jnp.float32, minval=-bound, maxval=bound)

    x = jnp.array([[1.0], [2.0]], dtype=jnp.float32)   # (2, 1)

    pred = jax.block_until_ready(linear_forward(x, weight_t, bias))
    ref = x @ weight_t + bias
    assert pred.shape == (2, output_size)
    assert jnp.allclose(pred, ref, atol=1e-6), (pred, ref)

    # --- exercise the general (MXU, full-K, exact-shape) path --------------
    B2, In2, Out2 = 300, 700, 260
    xb = jax.random.normal(k_x2, (B2, In2), jnp.float32)
    wtb = jax.random.normal(k_w2, (In2, Out2), jnp.float32) * (1.0 / In2 ** 0.5)
    bb = jax.random.normal(k_b2, (Out2,), jnp.float32)

    pred2 = jax.block_until_ready(linear_forward(xb, wtb, bb))
    ref2 = jnp.dot(xb, wtb, precision=jax.lax.Precision.HIGHEST) + bb
    assert pred2.shape == (B2, Out2)
    assert jnp.allclose(pred2, ref2, rtol=5e-2, atol=5e-2), (
        float(jnp.max(jnp.abs(pred2 - ref2))))

    print("KERNEL_OK")
</pallas_src>

<mosaic_0001>
module attributes {stable_mosaic.version = 11 : i64} {
  func.func @_linear_small_kernel(%arg0: i32, %arg1: memref<2x1xf32, #tpu.memory_space<vmem>>, %arg2: memref<1x1xf32, #tpu.memory_space<vmem>>, %arg3: memref<1x1xf32, #tpu.memory_space<vmem>>, %arg4: memref<2x1xf32, #tpu.memory_space<vmem>>) attributes {dimension_semantics = [#tpu.dimension_semantics<arbitrary>], iteration_bounds = array<i64: 1>, scalar_prefetch = 0 : i64, scratch_operands = 0 : i64, tpu.core_type = #tpu.core_type<tc>, window_params = [{pipeline_mode = #tpu.pipeline_mode<synchronous>, transform_indices = @transform_0, window_bounds = array<i64: 2, 1>}, {pipeline_mode = #tpu.pipeline_mode<synchronous>, transform_indices = @transform_1, window_bounds = array<i64: 1, 1>}, {pipeline_mode = #tpu.pipeline_mode<synchronous>, transform_indices = @transform_2, window_bounds = array<i64: 1, 1>}, {pipeline_mode = #tpu.pipeline_mode<synchronous>, transform_indices = @transform_3, window_bounds = array<i64: 2, 1>}]} {
    %c0 = arith.constant 0 : index
    %c0_0 = arith.constant 0 : index
    %0 = vector.load %arg1[%c0, %c0_0] : memref<2x1xf32, #tpu.memory_space<vmem>>, vector<2x1xf32>
    %c0_1 = arith.constant 0 : index
    %c0_2 = arith.constant 0 : index
    %1 = vector.load %arg2[%c0_1, %c0_2] : memref<1x1xf32, #tpu.memory_space<vmem>>, vector<1x1xf32>
    %c0_3 = arith.constant 0 : index
    %c0_4 = arith.constant 0 : index
    %2 = vector.load %arg3[%c0_3, %c0_4] : memref<1x1xf32, #tpu.memory_space<vmem>>, vector<1x1xf32>
    %3 = vector.broadcast %1 : vector<1x1xf32> to vector<2x1xf32>
    %4 = arith.mulf %0, %3 : vector<2x1xf32>
    %5 = vector.broadcast %2 : vector<1x1xf32> to vector<2x1xf32>
    %6 = arith.addf %4, %5 : vector<2x1xf32>
    %c0_5 = arith.constant 0 : index
    %c0_6 = arith.constant 0 : index
    %7 = vector.load %arg4[%c0_5, %c0_6] : memref<2x1xf32, #tpu.memory_space<vmem>>, vector<2x1xf32>
    tpu.vector_store %arg4[%c0_5, %c0_6], %6 {strides = array<i32>} : memref<2x1xf32, #tpu.memory_space<vmem>>, vector<2x1xf32>,
    return
  }
  func.func @transform_0(%arg0: i32) -> (i32, i32) {
    %c0_i32 = arith.constant 0 : i32
    %c0_i32_0 = arith.constant 0 : i32
    %c0_i32_1 = arith.constant 0 : i32
    return %c0_i32, %c0_i32_0 : i32, i32
  }
  func.func @transform_1(%arg0: i32) -> (i32, i32) {
    %c0_i32 = arith.constant 0 : i32
    %c0_i32_0 = arith.constant 0 : i32
    %c0_i32_1 = arith.constant 0 : i32
    return %c0_i32, %c0_i32_0 : i32, i32
  }
  func.func @transform_2(%arg0: i32) -> (i32, i32) {
    %c0_i32 = arith.constant 0 : i32
    %c0_i32_0 = arith.constant 0 : i32
    %c0_i32_1 = arith.constant 0 : i32
    return %c0_i32, %c0_i32_0 : i32, i32
  }
  func.func @transform_3(%arg0: i32) -> (i32, i32) {
    %c0_i32 = arith.constant 0 : i32
    %c0_i32_0 = arith.constant 0 : i32
    %c0_i32_1 = arith.constant 0 : i32
    return %c0_i32, %c0_i32_0 : i32, i32
  }
}

</mosaic_0001>

<llo_original>
// kernel: tpu_custom_call.1
$region0: #{tpu_custom_call.1}
  #allocation0 [shape = 'u32[]', space=smem, size = 0x4, offset = 0x4, fixed_abs, tag = 'smem constant byte address 0x4 - core index']
  #allocation1 [shape = 'u32[72,128]{1,0:T(1,128)}', space=vmem, size = 0x9000, scoped, tag = 'internal scratch']
  #allocation2 [shape = 'f32[1,1]{1,0:T(1,128)S(1)}', space=vmem, size = 0x200, scoped, tag = 'scoped memory for tpu_custom_call.1']
  #allocation3 [shape = 'f32[1,1]{1,0:T(1,128)S(1)}', space=vmem, size = 0x200, scoped, tag = 'scoped memory for tpu_custom_call.1']
  %s0 = inlined_call_operand.vmem [shape: f32[2,1], index: 0, kind: input, shape index: {}]
  %s1 = inlined_call_operand.<no memory space> [shape: f32[1,1], index: 1, kind: input, shape index: {}]
  %s2 = inlined_call_operand.<no memory space> [shape: f32[1,1], index: 2, kind: input, shape index: {}]
  %s3 = inlined_call_operand.vmem [shape: f32[2,1], index: 3, kind: output, shape index: {}]
  %s4 = sld [smem:[#allocation0]]
  $region22: #{tpu_custom_call.1} parent=0
    _
  %s6 = ssub.s32 1, %s4
  %s7 = scalar_select 0, %s6, %s4
  %v8 = vstv %s1
  %9 = vst [vmem:[#allocation2] sm:$0x1] %v8
  %v10 = vstv %s2
  %11 = vst [vmem:[#allocation3] sm:$0x1] %v10
  // Predicated region
  $region2: #{tpu_custom_call.1} parent=0 // pred_check
    _
  $region3: #{tpu_custom_call.1} parent=0 // pred_check_branch
    %13 = sbr.rel (0) target = $region5
  $region4: #{tpu_custom_call.1} parent=0 // pred_region
    _
  $region5: #{tpu_custom_call.1} parent=0 // pred_fallthru
    _
  // Predicated region
  $region6: #{tpu_custom_call.1} parent=0 // pred_check
    _
  $region7: #{tpu_custom_call.1} parent=0 // pred_check_branch
    %15 = sbr.rel (0) target = $region9
  $region8: #{tpu_custom_call.1} parent=0 // pred_region
    _
  $region9: #{tpu_custom_call.1} parent=0 // pred_fallthru
    _
  // Predicated region
  $region10: #{tpu_custom_call.1} parent=0 // pred_check
    _
  $region11: #{tpu_custom_call.1} parent=0 // pred_check_branch
    %17 = sbr.rel (0) target = $region13
  $region12: #{tpu_custom_call.1} parent=0 // pred_region
    _
  $region13: #{tpu_custom_call.1} parent=0 // pred_fallthru
    _
  %v18 = vld [vmem:[%s0] sm:$0x3]
  %v19 = vld [vmem:[#allocation2] sm:$0x1]
  %v20 = vld [vmem:[#allocation3] sm:$0x1]
  %v22 = vperm.slane %v19, 0
  %v24 = vmul.f32 %v18, %v22
  %v26 = vperm.slane %v20, 0
  %v28 = vadd.f32 %v24, %v26
  %vm29 = vcmask 1024
  %30 = vst.msk [vmem:[%s3] sm:$0x3] %vm29, %v28
  // Predicated region
  $region14: #{tpu_custom_call.1} parent=0 // pred_check
    _
  $region15: #{tpu_custom_call.1} parent=0 // pred_check_branch
    %32 = sbr.rel (0) target = $region17
  $region16: #{tpu_custom_call.1} parent=0 // pred_region
    _
  $region17: #{tpu_custom_call.1} parent=0 // pred_fallthru
    _
  // Predicated region
  $region18: #{tpu_custom_call.1} parent=0 // pred_check
    _
  $region19: #{tpu_custom_call.1} parent=0 // pred_check_branch
    %34 = sbr.rel (0) target = $region21
  $region20: #{tpu_custom_call.1} parent=0 // pred_region
    _
  $region21: #{tpu_custom_call.1} parent=0 // pred_fallthru
    _

</llo_original>
